<compile_context>
chip_gen: v5e
topology: v5e:2x2
jax: 0.10.0
libtpu: 0.0.40
codegen_flags: <defaults>
</compile_context>

<pallas_src>
import jax
import jax.numpy as jnp
from jax import lax
from jax.experimental import pallas as pl
from jax.experimental.pallas import tpu as pltpu

# ---------------------------------------------------------------------------
# Problem configuration (small, TemporalBlock-consistent shapes).
# ---------------------------------------------------------------------------
B = 2            # batch
C_IN = 4         # n_inputs
C_OUT = 8        # n_outputs (!= n_inputs -> downsample 1x1 conv is present)
L = 128          # sequence length (lane-friendly, multiple of 128)
K = 3            # kernel_size
STRIDE = 1
DILATION = 2
PADDING = 2      # length-preserving: L + 2*pad - dil*(K-1) == L
CENTER = PADDING // DILATION   # tap whose input slice equals the unshifted x

# The conv1 + 1x1-downsample fusion relies on this; keep the assert.
assert PADDING == CENTER * DILATION and 0 <= CENTER < K
assert L + 2 * PADDING - DILATION * (K - 1) == L
# NOTE: this block uses symmetric padding with no Chomp1d (non-causal variant),
# exactly as the PyTorch module is parameterized here.


def _shifted(v, s, t_idx):
    """v[:, t] -> v[:, t + s] along the time (lane) axis, zeros shifted in.

    s is a compile-time constant; only the needed one-sided boundary compare
    is emitted (masks are effectively static).
    """
    if s == 0:
        return v
    rolled = pltpu.roll(v, shift=(-s) % L, axis=1)   # rolled[:, t] = v[:, t + s]
    if s > 0:
        valid = t_idx < (L - s)
    else:
        valid = t_idx >= (-s)
    return jnp.where(valid, rolled, jnp.zeros_like(rolled))


def temporal_block_kernel(x_ref, wa_ref, w2_ref, o_ref):
    """One grid step == one batch element.

    x_ref  : (C_IN, L)  f32            raw input slice (im2col built in-kernel)
    wa_ref : (2*C_OUT, K*C_IN + 1) bf16  conv1 weight (rows 0..C_OUT-1) fused with
                                         the 1x1 downsample weight on the center
                                         tap (rows C_OUT..); last column = [b1; bd]
    w2_ref : (C_OUT, K*C_OUT + 1) bf16   conv2 weight, tap-major; last column = b2
    o_ref  : (C_OUT, L) f32
    """
    x = x_ref[...]                                           # (C_IN, L) f32
    t_idx = lax.broadcasted_iota(jnp.int32, (1, L), 1)       # lane index row

    # ---- in-kernel im2col + fused conv1 / residual-1x1 matmul ---------------
    taps1 = [_shifted(x, k * DILATION - PADDING, t_idx) for k in range(K)]
    taps1.append(jnp.ones((1, L), jnp.float32))              # bias (ones) row
    xcol = jnp.concatenate(taps1, axis=0).astype(jnp.bfloat16)   # (K*C_IN+1, L)

    hr = jnp.dot(wa_ref[...], xcol,
                 preferred_element_type=jnp.float32)         # (2*C_OUT, L) f32
    h1 = jnp.maximum(hr[:C_OUT, :], 0.0)    # ReLU; dropout1 = identity (eval)
    res = hr[C_OUT:, :]                     # downsample branch (no ReLU)

    # ---- conv2: shifted copies of h1 via roll + static boundary mask --------
    taps2 = [_shifted(h1, k * DILATION - PADDING, t_idx) for k in range(K)]
    taps2.append(jnp.ones((1, L), jnp.float32))              # bias (ones) row
    hcol = jnp.concatenate(taps2, axis=0).astype(jnp.bfloat16)   # (K*C_OUT+1, L)

    out = jnp.dot(w2_ref[...], hcol,
                  preferred_element_type=jnp.float32)        # (C_OUT, L) f32
    out = jnp.maximum(out, 0.0)             # ReLU; dropout2 = identity (eval)

    # ---- final ReLU(out + res) ----------------------------------------------
    o_ref[...] = jnp.maximum(out + res, 0.0)


def temporal_block(x, w1, b1, w2, b2, wd, bd):
    """x: (B, C_IN, L) float32  ->  (B, C_OUT, L) float32."""
    # ---- wrapper-side weight prep: tap-major flatten, fuse 1x1 + biases ------
    w1_flat = jnp.transpose(w1, (0, 2, 1)).reshape(C_OUT, K * C_IN)
    wd_flat = jnp.zeros((C_OUT, K * C_IN), w1.dtype)
    wd_flat = wd_flat.at[:, CENTER * C_IN:(CENTER + 1) * C_IN].set(wd)
    w_a = jnp.concatenate(
        [jnp.concatenate([w1_flat, b1.reshape(C_OUT, 1)], axis=1),
         jnp.concatenate([wd_flat, bd.reshape(C_OUT, 1)], axis=1)],
        axis=0).astype(jnp.bfloat16)                          # (2*C_OUT, K*C_IN+1)

    w2_flat = jnp.concatenate(
        [jnp.transpose(w2, (0, 2, 1)).reshape(C_OUT, K * C_OUT),
         b2.reshape(C_OUT, 1)], axis=1).astype(jnp.bfloat16)  # (C_OUT, K*C_OUT+1)

    grid_spec = pltpu.PrefetchScalarGridSpec(
        num_scalar_prefetch=0,
        grid=(B,),
        in_specs=[
            # one batch element per step; leading dim squeezed out of the ref
            pl.BlockSpec((None, C_IN, L), lambda b: (b, 0, 0)),
            # weights: same block every step -> stay VMEM-resident
            pl.BlockSpec((2 * C_OUT, K * C_IN + 1), lambda b: (0, 0)),
            pl.BlockSpec((C_OUT, K * C_OUT + 1), lambda b: (0, 0)),
        ],
        out_specs=pl.BlockSpec((None, C_OUT, L), lambda b: (b, 0, 0)),
    )

    return pl.pallas_call(
        temporal_block_kernel,
        out_shape=jax.ShapeDtypeStruct((B, C_OUT, L), jnp.float32),
        grid_spec=grid_spec,
        compiler_params=pltpu.CompilerParams(
            dimension_semantics=("parallel",)),
    )(x, w_a, w2_flat)


# ---------------------------------------------------------------------------
# Pure-JAX reference (lax conv, f32) for verification.
# ---------------------------------------------------------------------------
def ref_temporal_block(x, w1, b1, w2, b2, wd, bd):
    dn = ("NCH", "OIH", "NCH")

    def conv(inp, w, b, dil, pad):
        y = lax.conv_general_dilated(inp, w, window_strides=(STRIDE,),
                                     padding=[(pad, pad)], rhs_dilation=(dil,),
                                     dimension_numbers=dn)
        return y + b.reshape(1, -1, 1)

    h = jnp.maximum(conv(x, w1, b1, DILATION, PADDING), 0.0)    # conv1+relu
    out = jnp.maximum(conv(h, w2, b2, DILATION, PADDING), 0.0)  # conv2+relu
    res = conv(x, wd.reshape(C_OUT, C_IN, 1), bd, 1, 0)         # downsample 1x1
    return jnp.maximum(out + res, 0.0)


if __name__ == "__main__":
    key = jax.random.PRNGKey(0)
    kx, k1, k2, k3, k4, k5, k6 = jax.random.split(key, 7)

    # Deterministic parameter init (matches init_weights: N(0, 0.01) weights).
    x = jax.random.normal(kx, (B, C_IN, L), dtype=jnp.float32)
    w1 = 0.01 * jax.random.normal(k1, (C_OUT, C_IN, K), dtype=jnp.float32)
    b1 = 0.01 * jax.random.normal(k2, (C_OUT,), dtype=jnp.float32)
    w2 = 0.01 * jax.random.normal(k3, (C_OUT, C_OUT, K), dtype=jnp.float32)
    b2 = 0.01 * jax.random.normal(k4, (C_OUT,), dtype=jnp.float32)
    wd = 0.01 * jax.random.normal(k5, (C_OUT, C_IN), dtype=jnp.float32)
    bd = 0.01 * jax.random.normal(k6, (C_OUT,), dtype=jnp.float32)

    y = temporal_block(x, w1, b1, w2, b2, wd, bd)
    y = jax.block_until_ready(y)

    y_ref = ref_temporal_block(x, w1, b1, w2, b2, wd, bd)
    assert y.shape == (B, C_OUT, L)
    # Tolerance loosened vs f32 reference because MXU operands are bfloat16.
    assert jnp.allclose(y, y_ref, atol=3e-3, rtol=3e-2), "mismatch vs reference"

    # TODO(synk): Dropout layers are identity here (inference mode); training-mode
    # stochastic masking would use pltpu.prng_seed / pltpu.prng_random_bits.
    print("KERNEL_OK")
</pallas_src>

<mosaic_0001>
module attributes {stable_mosaic.version = 11 : i64} {
  func.func @temporal_block_kernel(%arg0: i32, %arg1: memref<1x4x128xf32, #tpu.memory_space<vmem>>, %arg2: memref<16x13xbf16, #tpu.memory_space<vmem>>, %arg3: memref<8x25xbf16, #tpu.memory_space<vmem>>, %arg4: memref<1x8x128xf32, #tpu.memory_space<vmem>>) attributes {dimension_semantics = [#tpu.dimension_semantics<parallel>], iteration_bounds = array<i64: 2>, scalar_prefetch = 0 : i64, scratch_operands = 0 : i64, tpu.core_type = #tpu.core_type<tc>, window_params = [{transform_indices = @transform_0, window_bounds = array<i64: 1, 4, 128>}, {pipeline_mode = #tpu.pipeline_mode<synchronous>, transform_indices = @transform_1, window_bounds = array<i64: 16, 13>}, {pipeline_mode = #tpu.pipeline_mode<synchronous>, transform_indices = @transform_2, window_bounds = array<i64: 8, 25>}, {transform_indices = @transform_3, window_bounds = array<i64: 1, 8, 128>}]} {
    %c0 = arith.constant 0 : index
    %c0_0 = arith.constant 0 : index
    %c0_1 = arith.constant 0 : index
    %0 = vector.load %arg1[%c0, %c0_0, %c0_1] : memref<1x4x128xf32, #tpu.memory_space<vmem>>, vector<1x4x128xf32>
    %1 = vector.shape_cast %0 : vector<1x4x128xf32> to vector<4x128xf32>
    %2 = tpu.iota {dimensions = array<i32: 1>} : vector<1x128xi32>
    %c2_i32 = arith.constant 2 : i32
    %3 = tpu.dynamic_rotate %1 by %c2_i32 dim 1 : vector<4x128xf32>, i32 -> vector<4x128xf32>
    %c2_i32_2 = arith.constant 2 : i32
    %4 = vector.broadcast %c2_i32_2 : i32 to vector<1x128xi32>
    %5 = arith.cmpi sge, %2, %4 : vector<1x128xi32>
    %cst = arith.constant 0.000000e+00 : f32
    %6 = vector.broadcast %cst : f32 to vector<4x128xf32>
    %7 = vector.shape_cast %5 : vector<1x128xi1> to vector<1x128xi1>
    %8 = vector.broadcast %7 : vector<1x128xi1> to vector<4x128xi1>
    %9 = arith.select %8, %3, %6 : vector<4x128xi1>, vector<4x128xf32>
    %c126_i32 = arith.constant 126 : i32
    %10 = tpu.dynamic_rotate %1 by %c126_i32 dim 1 : vector<4x128xf32>, i32 -> vector<4x128xf32>
    %c126_i32_3 = arith.constant 126 : i32
    %11 = vector.broadcast %c126_i32_3 : i32 to vector<1x128xi32>
    %12 = arith.cmpi slt, %2, %11 : vector<1x128xi32>
    %cst_4 = arith.constant 0.000000e+00 : f32
    %13 = vector.broadcast %cst_4 : f32 to vector<4x128xf32>
    %14 = vector.shape_cast %12 : vector<1x128xi1> to vector<1x128xi1>
    %15 = vector.broadcast %14 : vector<1x128xi1> to vector<4x128xi1>
    %16 = arith.select %15, %10, %13 : vector<4x128xi1>, vector<4x128xf32>
    %cst_5 = arith.constant 1.000000e+00 : f32
    %17 = vector.broadcast %cst_5 : f32 to vector<1x128xf32>
    %18 = tpu.concatenate %9, %1, %16, %17 in 0 : vector<4x128xf32>, vector<4x128xf32>, vector<4x128xf32>, vector<1x128xf32> -> vector<13x128xf32>
    %19 = arith.truncf %18 : vector<13x128xf32> to vector<13x128xbf16>
    %c0_6 = arith.constant 0 : index
    %c0_7 = arith.constant 0 : index
    %20 = vector.load %arg2[%c0_6, %c0_7] : memref<16x13xbf16, #tpu.memory_space<vmem>>, vector<16x13xbf16>
    %cst_8 = arith.constant dense<0.000000e+00> : vector<16x128xf32>
    %21 = tpu.matmul %20, %19, %cst_8 {dimension_numbers = #tpu.dot_dimension_numbers<[1], [0], [0], [1], [0, 0, 1, 1], [], []>} : vector<16x13xbf16>, vector<13x128xbf16>, vector<16x128xf32> -> vector<16x128xf32>
    %22 = vector.extract_strided_slice %21 {offsets = [0, 0], sizes = [8, 128], strides = [1, 1]} : vector<16x128xf32> to vector<8x128xf32>
    %cst_9 = arith.constant 0.000000e+00 : f32
    %23 = vector.broadcast %cst_9 : f32 to vector<8x128xf32>
    %24 = arith.maximumf %22, %23 : vector<8x128xf32>
    %25 = vector.extract_strided_slice %21 {offsets = [8, 0], sizes = [8, 128], strides = [1, 1]} : vector<16x128xf32> to vector<8x128xf32>
    %c2_i32_10 = arith.constant 2 : i32
    %26 = tpu.dynamic_rotate %24 by %c2_i32_10 dim 1 : vector<8x128xf32>, i32 -> vector<8x128xf32>
    %c2_i32_11 = arith.constant 2 : i32
    %27 = vector.broadcast %c2_i32_11 : i32 to vector<1x128xi32>
    %28 = arith.cmpi sge, %2, %27 : vector<1x128xi32>
    %cst_12 = arith.constant 0.000000e+00 : f32
    %29 = vector.broadcast %cst_12 : f32 to vector<8x128xf32>
    %30 = vector.shape_cast %28 : vector<1x128xi1> to vector<1x128xi1>
    %31 = vector.broadcast %30 : vector<1x128xi1> to vector<8x128xi1>
    %32 = arith.select %31, %26, %29 : vector<8x128xi1>, vector<8x128xf32>
    %c126_i32_13 = arith.constant 126 : i32
    %33 = tpu.dynamic_rotate %24 by %c126_i32_13 dim 1 : vector<8x128xf32>, i32 -> vector<8x128xf32>
    %c126_i32_14 = arith.constant 126 : i32
    %34 = vector.broadcast %c126_i32_14 : i32 to vector<1x128xi32>
    %35 = arith.cmpi slt, %2, %34 : vector<1x128xi32>
    %cst_15 = arith.constant 0.000000e+00 : f32
    %36 = vector.broadcast %cst_15 : f32 to vector<8x128xf32>
    %37 = vector.shape_cast %35 : vector<1x128xi1> to vector<1x128xi1>
    %38 = vector.broadcast %37 : vector<1x128xi1> to vector<8x128xi1>
    %39 = arith.select %38, %33, %36 : vector<8x128xi1>, vector<8x128xf32>
    %cst_16 = arith.constant 1.000000e+00 : f32
    %40 = vector.broadcast %cst_16 : f32 to vector<1x128xf32>
    %41 = tpu.concatenate %32, %24, %39, %40 in 0 : vector<8x128xf32>, vector<8x128xf32>, vector<8x128xf32>, vector<1x128xf32> -> vector<25x128xf32>
    %42 = arith.truncf %41 : vector<25x128xf32> to vector<25x128xbf16>
    %c0_17 = arith.constant 0 : index
    %c0_18 = arith.constant 0 : index
    %43 = vector.load %arg3[%c0_17, %c0_18] : memref<8x25xbf16, #tpu.memory_space<vmem>>, vector<8x25xbf16>
    %cst_19 = arith.constant dense<0.000000e+00> : vector<8x128xf32>
    %44 = tpu.matmul %43, %42, %cst_19 {dimension_numbers = #tpu.dot_dimension_numbers<[1], [0], [0], [1], [0, 0, 1, 1], [], []>} : vector<8x25xbf16>, vector<25x128xbf16>, vector<8x128xf32> -> vector<8x128xf32>
    %cst_20 = arith.constant 0.000000e+00 : f32
    %45 = vector.broadcast %cst_20 : f32 to vector<8x128xf32>
    %46 = arith.maximumf %44, %45 : vector<8x128xf32>
    %47 = arith.addf %46, %25 : vector<8x128xf32>
    %cst_21 = arith.constant 0.000000e+00 : f32
    %48 = vector.broadcast %cst_21 : f32 to vector<8x128xf32>
    %49 = arith.maximumf %47, %48 : vector<8x128xf32>
    %c0_22 = arith.constant 0 : index
    %c0_23 = arith.constant 0 : index
    %c0_24 = arith.constant 0 : index
    %50 = vector.load %arg4[%c0_22, %c0_23, %c0_24] : memref<1x8x128xf32, #tpu.memory_space<vmem>>, vector<1x8x128xf32>
    %51 = vector.shape_cast %50 : vector<1x8x128xf32> to vector<8x128xf32>
    %52 = vector.shape_cast %49 : vector<8x128xf32> to vector<1x8x128xf32>
    tpu.vector_store %arg4[%c0_22, %c0_23, %c0_24], %52 {strides = array<i32>} : memref<1x8x128xf32, #tpu.memory_space<vmem>>, vector<1x8x128xf32>,
    return
  }
  func.func @transform_0(%arg0: i32) -> (i32, i32, i32) {
    %c0_i32 = arith.constant 0 : i32
    %c0_i32_0 = arith.constant 0 : i32
    %c0_i32_1 = arith.constant 0 : i32
    return %arg0, %c0_i32, %c0_i32_0 : i32, i32, i32
  }
  func.func @transform_1(%arg0: i32) -> (i32, i32) {
    %c0_i32 = arith.constant 0 : i32
    %c0_i32_0 = arith.constant 0 : i32
    %c0_i32_1 = arith.constant 0 : i32
    return %c0_i32, %c0_i32_0 : i32, i32
  }
  func.func @transform_2(%arg0: i32) -> (i32, i32) {
    %c0_i32 = arith.constant 0 : i32
    %c0_i32_0 = arith.constant 0 : i32
    %c0_i32_1 = arith.constant 0 : i32
    return %c0_i32, %c0_i32_0 : i32, i32
  }
  func.func @transform_3(%arg0: i32) -> (i32, i32, i32) {
    %c0_i32 = arith.constant 0 : i32
    %c0_i32_0 = arith.constant 0 : i32
    %c0_i32_1 = arith.constant 0 : i32
    return %arg0, %c0_i32, %c0_i32_0 : i32, i32, i32
  }
}

</mosaic_0001>

<llo_original>
// kernel: tpu_custom_call.1
$region0: #{tpu_custom_call.1}
  #allocation0 [shape = 'u32[]', space=smem, size = 0x4, offset = 0x4, fixed_abs, tag = 'smem constant byte address 0x4 - core index']
  #allocation1 [shape = 'u32[72,128]{1,0:T(1,128)}', space=vmem, size = 0x9000, scoped, tag = 'internal scratch']
  %s0 = inlined_call_operand.hbm [shape: f32[2,4,128], index: 0, kind: input, shape index: {}]
  %s1 = inlined_call_operand.hbm [shape: bf16[16,13], index: 1, kind: input, shape index: {}]
  %s2 = inlined_call_operand.hbm [shape: bf16[8,25], index: 2, kind: input, shape index: {}]
  %s3 = inlined_call_operand.hbm [shape: f32[2,8,128], index: 3, kind: output, shape index: {}]
  %s4 = sld [smem:[#allocation0]]
  $region57: #{tpu_custom_call.1} parent=0
    _
  %s6 = ssub.s32 1, %s4
  %s7 = scalar_select 0, %s6, %s4
  $region1: #{tpu_custom_call.1} parent=0
    #allocation2 [shape = 'u8[4096]{0}', space=vmem, size = 0x1000, scoped, tag = 'input window, operand 0']
    #allocation3 [shape = 's32[2]{0}', space=sflag, size = 0x8, scoped, tag = 'scoped memory for tpu_custom_call.1']
    #allocation4 [shape = 's32[2]{0}', space=sflag, size = 0x8, scoped, tag = 'scoped memory for tpu_custom_call.1']
    #allocation5 [shape = 'u8[4096]{0}', space=vmem, size = 0x1000, scoped, tag = 'input window, operand 1, single buffered']
    #allocation6 [shape = 's32[1]{0}', space=sflag, size = 0x4, scoped, tag = 'scoped memory for tpu_custom_call.1']
    #allocation7 [shape = 'u8[2048]{0}', space=vmem, size = 0x800, scoped, tag = 'input window, operand 2, single buffered']
    #allocation8 [shape = 'u8[8192]{0}', space=vmem, size = 0x2000, scoped, tag = 'output window, operand 0']
    %8 = vsyncpa [#allocation3], 0
    %s9 = scalar_lea.sflag [#allocation3], 1
    %10 = vsyncpa %s9, 0
    %11 = vsyncpa [#allocation6], 0
    %12 = vsyncpa [#allocation4], 0
    %s13 = scalar_lea.sflag [#allocation4], 1
    %14 = vsyncpa %s13, 0
    loop: start=0, step=1, limit=4
    $region2: #{tpu_custom_call.1} parent=1 // loop_pre_header
      _
    $region3: #{tpu_custom_call.1} parent=1 // loop_header
      %s16 = sphi 0, %s20
      %p17 = scmp.ge.s32.totalorder %s16, 4
      %s26 = sphi 0, %s28
      %s29 = sphi 0, %s26
      %s30 = sphi 0, %s29
      %s46 = sphi 0, %s30
      %s50 = sphi 0, %s50
      %s52 = sphi 0, %s50
      %s53 = sphi 0, %s52
      %s67 = sphi 0, %s53
      %s71 = sphi 0, %s71
      %s73 = sphi 0, %s71
      %s74 = sphi 0, %s73
      %s88 = sphi 0, %s74
      %s94 = sphi 0, %s96
      %s97 = sphi 0, %s94
      %s98 = sphi 0, %s97
      %s114 = sphi 0, %s98
    $region4: #{tpu_custom_call.1} parent=1 // loop_header_branch
      %19 = sbr.rel (%p17) target = $region8
    $region5: #{tpu_custom_call.1} parent=1 // loop_body
      %s21 = ssub.s32 %s16, 1
      %s22 = ssub.s32 %s16, 2
      %s23 = sadd.s32 %s16, 1
      %s24 = ssub.s32 %s16, %s23
      %p25 = scmp.eq.s32.totalorder %s24, 0
      %s27 = sadd.s32 %s26, 1
      %s28 = scalar_select %p25, %s26, %s27
      %p31 = pneg %p25
      %p32 = scmp.eq.s32.totalorder %s16, 1
      %p33 = por %p31, %p32
      %p34 = scmp.ne.s32.totalorder %s26, %s29
      %p35 = scmp.eq.s32.totalorder %s16, 0
      %p36 = por %p34, %p35
      %p37 = scmp.ne.s32.totalorder %s26, %s29
      %p38 = scmp.eq.s32.totalorder %s21, 1
      %p39 = por %p37, %p38
      %p40 = scmp.ne.s32.totalorder %s29, %s30
      %p41 = scmp.eq.s32.totalorder %s21, 0
      %p42 = por %p40, %p41
      %p43 = scmp.ne.s32.totalorder %s29, %s30
      %p44 = scmp.eq.s32.totalorder %s22, 1
      %p45 = por %p43, %p44
      %p47 = scmp.ne.s32.totalorder %s30, %s46
      %p48 = scmp.eq.s32.totalorder %s22, 0
      %p49 = por %p47, %p48
      %s51 = sadd.s32 %s50, 1
      %p54 = scmp.eq.s32.totalorder %s16, 1
      %p55 = scmp.ne.s32.totalorder %s50, %s52
      %p56 = scmp.eq.s32.totalorder %s16, 0
      %p57 = por %p55, %p56
      %p58 = scmp.ne.s32.totalorder %s50, %s52
      %p59 = scmp.eq.s32.totalorder %s21, 1
      %p60 = por %p58, %p59
      %p61 = scmp.ne.s32.totalorder %s52, %s53
      %p62 = scmp.eq.s32.totalorder %s21, 0
      %p63 = por %p61, %p62
      %p64 = scmp.ne.s32.totalorder %s52, %s53
      %p65 = scmp.eq.s32.totalorder %s22, 1
      %p66 = por %p64, %p65
      %p68 = scmp.ne.s32.totalorder %s53, %s67
      %p69 = scmp.eq.s32.totalorder %s22, 0
      %p70 = por %p68, %p69
      %s72 = sadd.s32 %s71, 1
      %p75 = scmp.eq.s32.totalorder %s16, 1
      %p76 = scmp.ne.s32.totalorder %s71, %s73
      %p77 = scmp.eq.s32.totalorder %s16, 0
      %p78 = por %p76, %p77
      %p79 = scmp.ne.s32.totalorder %s71, %s73
      %p80 = scmp.eq.s32.totalorder %s21, 1
      %p81 = por %p79, %p80
      %p82 = scmp.ne.s32.totalorder %s73, %s74
      %p83 = scmp.eq.s32.totalorder %s21, 0
      %p84 = por %p82, %p83
      %p85 = scmp.ne.s32.totalorder %s73, %s74
      %p86 = scmp.eq.s32.totalorder %s22, 1
      %p87 = por %p85, %p86
      %p89 = scmp.ne.s32.totalorder %s74, %s88
      %p90 = scmp.eq.s32.totalorder %s22, 0
      %p91 = por %p89, %p90
      %s92 = ssub.s32 %s16, %s23
      %p93 = scmp.eq.s32.totalorder %s92, 0
      %s95 = sadd.s32 %s94, 1
      %s96 = scalar_select %p93, %s94, %s95
      %p99 = pneg %p93
      %p100 = scmp.eq.s32.totalorder %s16, 1
      %p101 = por %p99, %p100
      %p102 = scmp.ne.s32.totalorder %s94, %s97
      %p103 = scmp.eq.s32.totalorder %s16, 0
      %p104 = por %p102, %p103
      %p105 = scmp.ne.s32.totalorder %s94, %s97
      %p106 = scmp.eq.s32.totalorder %s21, 1
      %p107 = por %p105, %p106
      %p108 = scmp.ne.s32.totalorder %s97, %s98
      %p109 = scmp.eq.s32.totalorder %s21, 0
      %p110 = por %p108, %p109
      %p111 = scmp.ne.s32.totalorder %s97, %s98
      %p112 = scmp.eq.s32.totalorder %s22, 1
      %p113 = por %p111, %p112
      %p115 = scmp.ne.s32.totalorder %s98, %s114
      %p116 = scmp.eq.s32.totalorder %s22, 0
      %p117 = por %p115, %p116
      %p118 = scmp.le.s32.totalorder 1, %s16
      %p119 = scmp.lt.s32.totalorder %s16, 3
      %p120 = pnand %p118, %p119
      %p121 = pneg %p120
      // Predicated region
      $region9: #{tpu_custom_call.1} parent=5 // pred_check
        _
      $region10: #{tpu_custom_call.1} parent=5 // pred_check_branch
        %123 = sbr.rel (%p120) target = $region12
      $region11: #{tpu_custom_call.1} parent=5 // pred_region
        %s124 = ssub.s32 %s16, 1
        // Predicated region
        $region13: #{tpu_custom_call.1} parent=11 // pred_check
          %p125 = pneg %p63
        $region14: #{tpu_custom_call.1} parent=11 // pred_check_branch
          %127 = sbr.rel (%p125) target = $region16
        $region15: #{tpu_custom_call.1} parent=11 // pred_region
          %129 = vsyncadd [#allocation6], 0
          %s130 = sshll.u32 %s1, 4
          %s131 = int_to_ptr.hbm [resolvable:$true] %s130
          %s132 = sshll.u32 [#allocation5], 4
          %s133 = int_to_ptr.vmem [resolvable:$true] %s132
          %138 = dma.hbm_to_vmem [thread:$0]  %s131, 128, %s133, [#allocation6], 64, 64, 4
        $region16: #{tpu_custom_call.1} parent=11 // pred_fallthru
          _
        // Predicated region
        $region17: #{tpu_custom_call.1} parent=11 // pred_check
          %p139 = pneg %p84
        $region18: #{tpu_custom_call.1} parent=11 // pred_check_branch
          %141 = sbr.rel (%p139) target = $region20
        $region19: #{tpu_custom_call.1} parent=11 // pred_region
          %143 = vsyncadd [#allocation6], 0
          %s145 = sshll.u32 %s2, 4
          %s146 = int_to_ptr.hbm [resolvable:$true] %s145
          %s147 = sshll.u32 [#allocation7], 4
          %s148 = int_to_ptr.vmem [resolvable:$true] %s147
          %150 = dma.hbm_to_vmem [thread:$0]  %s146, 64, %s148, [#allocation6]
        $region20: #{tpu_custom_call.1} parent=11 // pred_fallthru
          _
      $region12: #{tpu_custom_call.1} parent=5 // pred_fallthru
        _
      %p151 = scmp.lt.s32.totalorder %s16, 2
      // Predicated region
      $region21: #{tpu_custom_call.1} parent=5 // pred_check
        %p152 = pneg %p151
      $region22: #{tpu_custom_call.1} parent=5 // pred_check_branch
        %154 = sbr.rel (%p152) target = $region24
      $region23: #{tpu_custom_call.1} parent=5 // pred_region
        // Predicated region
        $region25: #{tpu_custom_call.1} parent=23 // pred_check
          %p155 = pneg %p36
        $region26: #{tpu_custom_call.1} parent=23 // pred_check_branch
          %157 = sbr.rel (%p155) target = $region28
        $region27: #{tpu_custom_call.1} parent=23 // pred_region
          %s158 = sand.u32 %s26, 1
          %s159 = scalar_lea.sflag [#allocation3], %s158
          %s160 = sand.u32 %s26, 1
          %s161 = smul.addr %s160, 4
          %s162 = scalar_lea.vmem [#allocation2], %s161
          %164 = vsyncadd %s159, 0
          %s165 = smul.addr %s16, 4
          %s166 = scalar_lea.hbm %s0, %s165
          %s168 = sshll.u32 %s166, 4
          %s169 = int_to_ptr.hbm [resolvable:$true] %s168
          %s170 = sshll.u32 %s162, 4
          %s171 = int_to_ptr.vmem [resolvable:$true] %s170
          %173 = dma.hbm_to_vmem [thread:$0]  %s169, 64, %s171, %s159
        $region28: #{tpu_custom_call.1} parent=23 // pred_fallthru
          _
      $region24: #{tpu_custom_call.1} parent=5 // pred_fallthru
        _
      %p174 = scmp.le.s32.totalorder 1, %s16
      %p175 = scmp.lt.s32.totalorder %s16, 3
      %p176 = pnand %p174, %p175
      %p177 = pneg %p176
      // Predicated region
      $region29: #{tpu_custom_call.1} parent=5 // pred_check
        _
      $region30: #{tpu_custom_call.1} parent=5 // pred_check_branch
        %179 = sbr.rel (%p176) target = $region32
      $region31: #{tpu_custom_call.1} parent=5 // pred_region
        %s180 = ssub.s32 %s16, 1
        %s181 = sand.u32 %s29, 1
        %s182 = scalar_lea.sflag [#allocation3], %s181
        %s183 = sand.u32 %s29, 1
        %s184 = smul.addr %s183, 4
        %s185 = scalar_lea.vmem [#allocation2], %s184
        // Predicated region
        $region33: #{tpu_custom_call.1} parent=31 // pred_check
          %p186 = pneg %p42
        $region34: #{tpu_custom_call.1} parent=31 // pred_check_branch
          %188 = sbr.rel (%p186) target = $region36
        $region35: #{tpu_custom_call.1} parent=31 // pred_region
          %190 = dma.done %s182, 64
        $region36: #{tpu_custom_call.1} parent=31 // pred_fallthru
          _
        // Predicated region
        $region37: #{tpu_custom_call.1} parent=31 // pred_check
          %p191 = pneg %p63
        $region38: #{tpu_custom_call.1} parent=31 // pred_check_branch
          %193 = sbr.rel (%p191) target = $region40
        $region39: #{tpu_custom_call.1} parent=31 // pred_region
          %195 = dma.done [#allocation6], 128
        $region40: #{tpu_custom_call.1} parent=31 // pred_fallthru
          _
        // Predicated region
        $region41: #{tpu_custom_call.1} parent=31 // pred_check
          %p196 = pneg %p84
        $region42: #{tpu_custom_call.1} parent=31 // pred_check_branch
          %198 = sbr.rel (%p196) target = $region44
        $region43: #{tpu_custom_call.1} parent=31 // pred_region
          %200 = dma.done [#allocation6], 64
        $region44: #{tpu_custom_call.1} parent=31 // pred_fallthru
          _
        %s201 = sand.u32 %s29, 1
        %s202 = scalar_lea.sflag [#allocation3], %s201
        %s203 = sand.u32 %s29, 1
        %s204 = smul.addr %s203, 4
        %s205 = scalar_lea.vmem [#allocation2], %s204
        %p206 = pneg %p42
        %p207 = pneg %p39
        %p208 = pneg %p63
        %p209 = pneg %p60
        %p210 = pneg %p84
        %p211 = pneg %p81
        %p212 = pneg %p110
        %p213 = pneg %p107
        %s214 = sand.u32 %s97, 1
        %s215 = scalar_lea.sflag [#allocation4], %s214
        %s216 = sand.u32 %s97, 1
        %s217 = smul.addr %s216, 8
        %s218 = scalar_lea.vmem [#allocation8], %s217
        %v220 = vld [vmem:[%s185] sm:$0xf]
        %v221 = vlaneseq
        %v222 = vand.u32 %v221, 127
        %223 = vrot.lane.b32.xlu0 %v220, 2
        %v224 = vpop.permute.xlu0 %223
        %vm225 = vcmp.ge.s32.totalorder %v222, 2
        %v226 = vsel %vm225, 1, 0
        %vm227 = vcmp.eq.s32.totalorder %v226, 1
        %v228 = vsel %vm227, %v224, 0.0
        %229 = vrot.lane.b32.xlu0 %v220, 126
        %v230 = vpop.permute.xlu0 %229
        %vm231 = vcmp.lt.s32.totalorder %v222, 126
        %v232 = vsel %vm231, 1, 0
        %vm233 = vcmp.eq.s32.totalorder %v232, 1
        %v234 = vsel %vm233, %v230, 0.0
        %v236 = vrot.slane %v220, 4
        %vm238 = vcmask 1043456
        %v239 = vsel %vm238, %v228, %v236
        %v240 = vsel %vm238, %v234, 1.0
        %v241 = vpack.c.bf16 %v240, %v239
        %v242 = vld [vmem:[#allocation5] sm:$0xf]
        %v243 = vld [vmem:[#allocation5 + $0x4] sm:$0xf]
        %v246 = vunpack.c.l.b16 %v242
        %v247 = vunpack.c.l.b16 %v243
        %v248 = vpack.c.b16 %v247, %v246
        %vm249 = vcmask 105472
        %v251 = vsel %vm249, %v248, 0
        %vm253 = vcmask 1045504
        %vm254 = vcmask 1046528
        %v255 = vsel %vm253, 4294967295, 65535
        %v256 = vsel %vm254, %v255, 0
        %v258 = vand.u32 %v241, %v256
        %260 = vmatpush.bf16.msra.mxu0 0
        %261 = vmatpush.bf16.msra.mxu0 0
        %262 = vmatpush.bf16.msra.mxu0 0
        %263 = vmatpush.bf16.msra.mxu0 0
        %264 = vmatpush.bf16.msra.mxu0 0
        %265 = vmatpush.bf16.msra.mxu0 0
        %266 = vmatpush.bf16.msra.mxu0 0
        %267 = vmatpush.bf16.msra.mxu0 %v258
        %268 = vmatmul.bf16.gmra.mxu0 %v251
        %v269 = vpop.f32.mrf.mxu0
        %v270 = vadd.f32 0.0, %v269
        %v271 = vpop.f32.mrf.mxu0
        %v272 = vadd.f32 0.0, %v271
        %273 = vdwg.mxu0
        %v274 = vmax.f32 %v270, 0.0
        %275 = vrot.lane.b32.xlu0 %v274, 2
        %v276 = vpop.permute.xlu0 %275
        %v277 = vsel %vm227, %v276, 0.0
        %278 = vrot.lane.b32.xlu0 %v274, 126
        %v279 = vpop.permute.xlu0 %278
        %v280 = vsel %vm233, %v279, 0.0
        %v281 = vpack.c.bf16 %v274, %v277
        %v282 = vpack.c.bf16 1.0, %v280
        %v283 = vld [vmem:[#allocation7] sm:$0xf]
        %vm284 = vcmask 203776
        %v286 = vsel %vm284, %v283, 0
        %vm288 = vcmask 1044480
        %v289 = vsel %vm238, 4294967295, 65535
        %v290 = vsel %vm288, %v289, 0
        %v292 = vand.u32 %v282, %v290
        %294 = vmatpush.bf16.msra.mxu0 0
        %295 = vmatpush.bf16.msra.mxu0 0
        %296 = vmatpush.bf16.msra.mxu0 0
        %297 = vmatpush.bf16.msra.mxu0 0
        %298 = vmatpush.bf16.msra.mxu0 0
        %299 = vmatpush.bf16.msra.mxu0 0
        %300 = vmatpush.bf16.msra.mxu0 %v292
        %301 = vmatpush.bf16.msra.mxu0 %v281
        %302 = vmatmul.bf16.gmra.mxu0 %v286
        %v303 = vpop.f32.mrf.mxu0
        %v304 = vadd.f32 0.0, %v303
        %v305 = vpop.f32.mrf.mxu0
        %306 = vdwg.mxu0
        %v307 = vmax.f32 %v304, 0.0
        %v308 = vadd.f32 %v307, %v272
        %v309 = vmax.f32 %v308, 0.0
        %310 = vst [vmem:[%s218] sm:$0xff] %v309
        %s311 = sand.u32 %s97, 1
        %s312 = scalar_lea.sflag [#allocation4], %s311
        %s313 = sand.u32 %s97, 1
        %s314 = smul.addr %s313, 8
        %s315 = scalar_lea.vmem [#allocation8], %s314
        // Predicated region
        $region45: #{tpu_custom_call.1} parent=31 // pred_check
          %p316 = pneg %p107
        $region46: #{tpu_custom_call.1} parent=31 // pred_check_branch
          %318 = sbr.rel (%p316) target = $region48
        $region47: #{tpu_custom_call.1} parent=31 // pred_region
          %320 = vsyncadd %s312, 0
          %s321 = smul.addr %s21, 8
          %s322 = scalar_lea.hbm %s3, %s321
          %s324 = sshll.u32 %s315, 4
          %s325 = int_to_ptr.vmem [resolvable:$true] %s324
          %s326 = sshll.u32 %s322, 4
          %s327 = int_to_ptr.hbm [resolvable:$true] %s326
          %329 = dma.vmem_to_hbm [thread:$0]  %s325, 128, %s327, %s312
        $region48: #{tpu_custom_call.1} parent=31 // pred_fallthru
          _
      $region32: #{tpu_custom_call.1} parent=5 // pred_fallthru
        _
      %p330 = scmp.le.s32.totalorder 2, %s16
      // Predicated region
      $region49: #{tpu_custom_call.1} parent=5 // pred_check
        %p331 = pneg %p330
      $region50: #{tpu_custom_call.1} parent=5 // pred_check_branch
        %333 = sbr.rel (%p331) target = $region52
      $region51: #{tpu_custom_call.1} parent=5 // pred_region
        %s334 = ssub.s32 %s16, 2
        // Predicated region
        $region53: #{tpu_custom_call.1} parent=51 // pred_check
          %p335 = pneg %p113
        $region54: #{tpu_custom_call.1} parent=51 // pred_check_branch
          %337 = sbr.rel (%p335) target = $region56
        $region55: #{tpu_custom_call.1} parent=51 // pred_region
          %s338 = sand.u32 %s98, 1
          %s339 = scalar_lea.sflag [#allocation4], %s338
          %s340 = sand.u32 %s98, 1
          %s341 = smul.addr %s340, 8
          %s342 = scalar_lea.vmem [#allocation8], %s341
          %344 = dma.done %s339, 128
        $region56: #{tpu_custom_call.1} parent=51 // pred_fallthru
          _
      $region52: #{tpu_custom_call.1} parent=5 // pred_fallthru
        _
    $region6: #{tpu_custom_call.1} parent=1 // loop_footer
      %s20 = sadd.s32 1, %s16
    $region7: #{tpu_custom_call.1} parent=1 // loop_footer_branch
      %15 = sbr.rel target = $region3
    $region8: #{tpu_custom_call.1} parent=1 // loop_exit
      _
    %345 = vsyncpa [#allocation3], 1
    %s346 = scalar_lea.sflag [#allocation3], 1
    %347 = vsyncpa %s346, 1
    %348 = vsyncpa [#allocation6], 1
    %349 = vsyncpa [#allocation4], 1
    %s350 = scalar_lea.sflag [#allocation4], 1
    %351 = vsyncpa %s350, 1

</llo_original>
